<compile_context>
chip_gen: v5e
topology: v5e:2x2
jax: 0.10.0
libtpu: 0.0.40
codegen_flags: <defaults>
</compile_context>

<pallas_src>
import functools

import jax
import jax.numpy as jnp
from jax.experimental import pallas as pl
from jax.experimental.pallas import tpu as pltpu

_I32_SIGN_LO = 0x7FFFFFFF   # low 31 bits
_I32_MIN = -(2 ** 31)


def _row_topk_kernel(x_ref, out_ref, *, beam_size):
    """Exact per-row top-`beam_size` over the lane axis of a (RB, V) block.

    Output (RB, 2*beam) int32: lanes [0,beam) = f32 value bits of the winners
    (descending), lanes [beam, 2*beam) = their column indices.
    Ties break toward the lowest column; winners are masked by column index so
    -inf inputs never produce duplicates.  NaN inputs are assumed absent
    (finite log-probs, as in the PyTorch module).
    """
    x = x_ref[...]                                              # (RB, V), input dtype
    bits = pltpu.bitcast(x.astype(jnp.float32), jnp.int32)      # f32 bit pattern
    # Monotone map f32 -> signed int32: order of `key` == order of the floats.
    key = jnp.where(bits >= 0, bits, bits ^ jnp.int32(_I32_SIGN_LO))
    col = jax.lax.broadcasted_iota(jnp.int32, key.shape, 1)     # lane index (hoisted)

    big_col = jnp.int32(key.shape[1])
    masked = jnp.int32(_I32_MIN)    # strictly below any real key (incl. -inf)

    val_bits, cols = [], []
    # beam_size is tiny -> Python loop unrolls at trace time.
    for t in range(beam_size):
        m = jnp.max(key, axis=1, keepdims=True)                               # (RB, 1)
        am = jnp.min(jnp.where(key == m, col, big_col), axis=1, keepdims=True)
        # Undo the monotone map on the tiny winner column -> exact f32 bits.
        val_bits.append(jnp.where(m >= 0, m, m ^ jnp.int32(_I32_SIGN_LO)))
        cols.append(am)
        if t + 1 < beam_size:
            key = jnp.where(col == am, masked, key)             # mask winner by index

    # Pack both results into one (RB, 2*beam) int32 block -> single output DMA.
    lane = jax.lax.broadcasted_iota(jnp.int32, out_ref.shape, 1)
    out = jnp.zeros(out_ref.shape, jnp.int32)
    for k in range(beam_size):
        out = jnp.where(lane == k, val_bits[k], out)
        out = jnp.where(lane == beam_size + k, cols[k], out)
    out_ref[...] = out


def _pick_rows_block(num_rows, per_row_bytes):
    """Rows per grid step, sized against the real VMEM working set.

    per_row_bytes = V * (2*itemsize + 8): double-buffered input row + int32
    sortable key + int32 lane iota.  Keep a multiple of 8 sublanes, and keep
    >= 4 grid steps when enough rows exist (v7x: 2 TensorCores need >= 2 steps
    each for DMA/compute overlap).
    """
    budget = 8 << 20                                   # ~8 MiB live per block
    rb = max(1, budget // max(1, per_row_bytes))
    rb = min(rb, num_rows)
    rb = -(-rb // 8) * 8                               # round up to 8 sublanes
    if num_rows >= 32:
        rb = min(rb, max(8, (num_rows // 4) // 8 * 8))
    return max(8, rb)


def _per_row_topk(rows, beam_size):
    """Run the Pallas kernel: rows (R, V) -> (values (R, beam) f32, cols (R, beam) i32)."""
    R, V = rows.shape
    per_row_bytes = V * (2 * rows.dtype.itemsize + 8)
    RB = _pick_rows_block(R, per_row_bytes)
    grid_n = -(-R // RB)
    R_pad = grid_n * RB
    if R_pad != R:
        rows = jnp.pad(rows, ((0, R_pad - R), (0, 0)))

    out = pl.pallas_call(
        functools.partial(_row_topk_kernel, beam_size=beam_size),
        grid_spec=pltpu.PrefetchScalarGridSpec(
            num_scalar_prefetch=0,
            grid=(grid_n,),
            in_specs=[pl.BlockSpec((RB, V), lambda b: (b, 0))],
            out_specs=pl.BlockSpec((RB, 2 * beam_size), lambda b: (b, 0)),
        ),
        out_shape=jax.ShapeDtypeStruct((R_pad, 2 * beam_size), jnp.int32),
        compiler_params=pltpu.CompilerParams(
            dimension_semantics=("parallel",),
            vmem_limit_bytes=32 * 1024 * 1024,
        ),
        cost_estimate=pl.CostEstimate(
            flops=6 * beam_size * R_pad * V,
            transcendentals=0,
            bytes_accessed=R_pad * V * rows.dtype.itemsize + R_pad * 2 * beam_size * 4,
        ),
    )(rows)

    vals = jax.lax.bitcast_convert_type(out[:R, :beam_size], jnp.float32)   # (R, beam)
    cols = out[:R, beam_size:]                                              # (R, beam) i32
    return vals, cols


def beam_feedback_forward(past_p, cur_p, batch_size, beam_size, output_size, step):
    """Pallas equivalent of BeamFeedBack.forward. Returns (new_past_p, symbols, back_ptr)."""
    V = output_size
    beam = beam_size
    cur2 = cur_p.reshape(batch_size * beam, V)          # keep input dtype on the wire

    if step == 0:
        # Only beam row 0 of each batch element participates: slice to a dense
        # (batch, V) 2-D array in the wrapper (tiny, once per decode).
        rows = cur2.reshape(batch_size, beam, V)[:, 0, :]
        cand_vals, cand_cols = _per_row_topk(rows, beam)        # (batch, beam)
        top_v = cand_vals
        top_id = cand_cols                                      # already in [0, V)
    else:
        cand_vals, cand_cols = _per_row_topk(cur2, beam)        # (batch*beam, beam)
        # Cross-row finish on beam*beam candidates per batch element (tiny XLA).
        # Adding past_p per row does not change per-row ordering, so the
        # candidate set is exact; the add itself stays in f32.
        past = past_p.reshape(batch_size * beam, 1).astype(jnp.float32)
        scores = cand_vals + past                               # (batch*beam, beam)
        row_in_beam = (jnp.arange(batch_size * beam, dtype=jnp.int32) % beam)[:, None]
        flat = row_in_beam * V + cand_cols                      # flat id within beam*V
        scores_b = scores.reshape(batch_size, beam * beam)
        flat_b = flat.reshape(batch_size, beam * beam)
        top_v, top_j = jax.lax.top_k(scores_b, beam)            # (batch, beam)
        top_id = jnp.take_along_axis(flat_b, top_j, axis=1)

    back_ptr = top_id // V                                      # tiny (batch, beam) ops
    symbols = top_id % V
    new_past_p = top_v.reshape(-1, 1)                           # == top_v.view(-1, 1)
    return new_past_p, symbols, back_ptr


class BeamFeedBack:
    """Thin stateful wrapper mirroring the PyTorch module (keep_ids bookkeeping)."""
    # TODO(synk): collect() (beam backtracking over Python lists) is host-side
    # bookkeeping, not a kernel hot path; only forward() is implemented in Pallas.
    # The nn.Embedding `lookup` is only consulted for num_embeddings (== V).

    def __init__(self, output_size, beam_size, unk_idx=-1):
        self.beam_size = beam_size
        self.output_size = output_size
        self.unk_idx = unk_idx
        self.back_pointers = []
        self.symbols = []

    def forward(self, past_p, cur_p, batch_size, step, keep_ids=True):
        new_past, symbols, back_ptr = beam_feedback_forward(
            past_p, cur_p, batch_size, self.beam_size, self.output_size, step)
        if keep_ids:
            self.back_pointers.append(back_ptr.reshape(-1, 1))
            self.symbols.append(symbols.reshape(-1, 1))
        return new_past, symbols

    def clear_ids(self):
        self.symbols = []
        self.back_pointers = []


if __name__ == "__main__":
    key = jax.random.PRNGKey(0)
    batch, beam, V = 2, 4, 512          # output_size == lookup.num_embeddings

    k1, k2, k3, k4 = jax.random.split(key, 4)
    cur_p = jax.random.normal(k1, (batch * beam, V), dtype=jnp.float32)
    past_p = jax.random.normal(k2, (batch * beam, 1), dtype=jnp.float32)

    # ---- step > 0 path ----
    new_past, sym, bp = beam_feedback_forward(past_p, cur_p, batch, beam, V, step=1)
    jax.block_until_ready((new_past, sym, bp))
    score_ref = (cur_p + past_p).reshape(batch, beam * V)
    ref_v, _ = jax.lax.top_k(score_ref, beam)
    assert jnp.allclose(new_past, ref_v.reshape(-1, 1), atol=1e-6)
    flat = bp * V + sym
    gathered = jnp.take_along_axis(score_ref, flat, axis=1)
    assert jnp.allclose(gathered, ref_v, atol=1e-6)       # selected scores == top scores
    srt = jnp.sort(flat, axis=1)
    assert bool(jnp.all(srt[:, 1:] != srt[:, :-1]))       # distinct selections
    assert bool(jnp.all((bp >= 0) & (bp < beam)))
    assert bool(jnp.all((sym >= 0) & (sym < V)))

    # ---- step == 0 path (only beam row 0 participates) ----
    new_past0, sym0, bp0 = beam_feedback_forward(past_p, cur_p, batch, beam, V, step=0)
    jax.block_until_ready((new_past0, sym0, bp0))
    score0 = cur_p.reshape(batch, -1)[:, :V]
    r0v, _ = jax.lax.top_k(score0, beam)
    assert jnp.allclose(new_past0, r0v.reshape(-1, 1), atol=1e-6)
    g0 = jnp.take_along_axis(score0, sym0, axis=1)
    assert jnp.allclose(g0, r0v, atol=1e-6)
    assert jnp.array_equal(bp0, jnp.zeros((batch, beam), jnp.int32))

    # ---- multi-grid-step + padded path (batch=9 -> 36 rows, RB=8, grid=5, pad->40) ----
    batch2 = 9
    cur_p2 = jax.random.normal(k3, (batch2 * beam, V), dtype=jnp.float32)
    past_p2 = jax.random.normal(k4, (batch2 * beam, 1), dtype=jnp.float32)
    np2, sym2, bp2 = beam_feedback_forward(past_p2, cur_p2, batch2, beam, V, step=3)
    jax.block_until_ready((np2, sym2, bp2))
    score2 = (cur_p2 + past_p2).reshape(batch2, beam * V)
    r2v, _ = jax.lax.top_k(score2, beam)
    assert jnp.allclose(np2, r2v.reshape(-1, 1), atol=1e-6)
    g2 = jnp.take_along_axis(score2, bp2 * V + sym2, axis=1)
    assert jnp.allclose(g2, r2v, atol=1e-6)

    # ---- class wrapper (keep_ids bookkeeping) ----
    fb = BeamFeedBack(output_size=V, beam_size=beam)
    npast, s = fb.forward(past_p, cur_p, batch, step=1)
    jax.block_until_ready((npast, s))
    assert fb.back_pointers[-1].shape == (batch * beam, 1)
    assert fb.symbols[-1].shape == (batch * beam, 1)

    print("KERNEL_OK")
</pallas_src>

<mosaic_0001>
module attributes {stable_mosaic.version = 11 : i64} {
  func.func @_row_topk_kernel(%arg0: i32, %arg1: memref<8x512xf32, #tpu.memory_space<vmem>>, %arg2: memref<8x8xi32, #tpu.memory_space<vmem>>) attributes {dimension_semantics = [#tpu.dimension_semantics<parallel>], iteration_bounds = array<i64: 1>, scalar_prefetch = 0 : i64, scratch_operands = 0 : i64, tpu.core_type = #tpu.core_type<tc>, window_params = [{transform_indices = @transform_0, window_bounds = array<i64: 8, 512>}, {transform_indices = @transform_1, window_bounds = array<i64: 8, 8>}]} {
    %c0 = arith.constant 0 : index
    %c0_0 = arith.constant 0 : index
    %0 = vector.load %arg1[%c0, %c0_0] : memref<8x512xf32, #tpu.memory_space<vmem>>, vector<8x512xf32>
    %1 = tpu.bitcast %0 : vector<8x512xf32> -> vector<8x512xi32>
    %c0_i32 = arith.constant 0 : i32
    %2 = vector.broadcast %c0_i32 : i32 to vector<8x512xi32>
    %3 = arith.cmpi sge, %1, %2 : vector<8x512xi32>
    %c2147483647_i32 = arith.constant 2147483647 : i32
    %4 = vector.broadcast %c2147483647_i32 : i32 to vector<8x512xi32>
    %5 = arith.xori %1, %4 : vector<8x512xi32>
    %6 = arith.select %3, %1, %5 : vector<8x512xi1>, vector<8x512xi32>
    %7 = tpu.iota {dimensions = array<i32: 1>} : vector<8x512xi32>
    %cst = arith.constant dense<-2147483648> : vector<8xi32>
    %8 = vector.multi_reduction <maxsi>, %6, %cst [1] : vector<8x512xi32> to vector<8xi32>
    %9 = vector.shape_cast %8 : vector<8xi32> to vector<8x1xi32>
    %10 = vector.broadcast %9 : vector<8x1xi32> to vector<8x512xi32>
    %11 = arith.cmpi eq, %6, %10 : vector<8x512xi32>
    %c512_i32 = arith.constant 512 : i32
    %12 = vector.broadcast %c512_i32 : i32 to vector<8x512xi32>
    %13 = arith.select %11, %7, %12 : vector<8x512xi1>, vector<8x512xi32>
    %cst_1 = arith.constant dense<2147483647> : vector<8xi32>
    %14 = vector.multi_reduction <minsi>, %13, %cst_1 [1] : vector<8x512xi32> to vector<8xi32>
    %15 = vector.shape_cast %14 : vector<8xi32> to vector<8x1xi32>
    %c0_i32_2 = arith.constant 0 : i32
    %16 = vector.broadcast %c0_i32_2 : i32 to vector<8x1xi32>
    %17 = arith.cmpi sge, %9, %16 : vector<8x1xi32>
    %c2147483647_i32_3 = arith.constant 2147483647 : i32
    %18 = vector.broadcast %c2147483647_i32_3 : i32 to vector<8x1xi32>
    %19 = arith.xori %9, %18 : vector<8x1xi32>
    %20 = arith.select %17, %9, %19 : vector<8x1xi1>, vector<8x1xi32>
    %21 = vector.broadcast %15 : vector<8x1xi32> to vector<8x512xi32>
    %22 = arith.cmpi eq, %7, %21 : vector<8x512xi32>
    %c-2147483648_i32 = arith.constant -2147483648 : i32
    %23 = vector.broadcast %c-2147483648_i32 : i32 to vector<8x512xi32>
    %24 = arith.select %22, %23, %6 : vector<8x512xi1>, vector<8x512xi32>
    %cst_4 = arith.constant dense<-2147483648> : vector<8xi32>
    %25 = vector.multi_reduction <maxsi>, %24, %cst_4 [1] : vector<8x512xi32> to vector<8xi32>
    %26 = vector.shape_cast %25 : vector<8xi32> to vector<8x1xi32>
    %27 = vector.broadcast %26 : vector<8x1xi32> to vector<8x512xi32>
    %28 = arith.cmpi eq, %24, %27 : vector<8x512xi32>
    %c512_i32_5 = arith.constant 512 : i32
    %29 = vector.broadcast %c512_i32_5 : i32 to vector<8x512xi32>
    %30 = arith.select %28, %7, %29 : vector<8x512xi1>, vector<8x512xi32>
    %cst_6 = arith.constant dense<2147483647> : vector<8xi32>
    %31 = vector.multi_reduction <minsi>, %30, %cst_6 [1] : vector<8x512xi32> to vector<8xi32>
    %32 = vector.shape_cast %31 : vector<8xi32> to vector<8x1xi32>
    %c0_i32_7 = arith.constant 0 : i32
    %33 = vector.broadcast %c0_i32_7 : i32 to vector<8x1xi32>
    %34 = arith.cmpi sge, %26, %33 : vector<8x1xi32>
    %c2147483647_i32_8 = arith.constant 2147483647 : i32
    %35 = vector.broadcast %c2147483647_i32_8 : i32 to vector<8x1xi32>
    %36 = arith.xori %26, %35 : vector<8x1xi32>
    %37 = arith.select %34, %26, %36 : vector<8x1xi1>, vector<8x1xi32>
    %38 = vector.broadcast %32 : vector<8x1xi32> to vector<8x512xi32>
    %39 = arith.cmpi eq, %7, %38 : vector<8x512xi32>
    %c-2147483648_i32_9 = arith.constant -2147483648 : i32
    %40 = vector.broadcast %c-2147483648_i32_9 : i32 to vector<8x512xi32>
    %41 = arith.select %39, %40, %24 : vector<8x512xi1>, vector<8x512xi32>
    %cst_10 = arith.constant dense<-2147483648> : vector<8xi32>
    %42 = vector.multi_reduction <maxsi>, %41, %cst_10 [1] : vector<8x512xi32> to vector<8xi32>
    %43 = vector.shape_cast %42 : vector<8xi32> to vector<8x1xi32>
    %44 = vector.broadcast %43 : vector<8x1xi32> to vector<8x512xi32>
    %45 = arith.cmpi eq, %41, %44 : vector<8x512xi32>
    %c512_i32_11 = arith.constant 512 : i32
    %46 = vector.broadcast %c512_i32_11 : i32 to vector<8x512xi32>
    %47 = arith.select %45, %7, %46 : vector<8x512xi1>, vector<8x512xi32>
    %cst_12 = arith.constant dense<2147483647> : vector<8xi32>
    %48 = vector.multi_reduction <minsi>, %47, %cst_12 [1] : vector<8x512xi32> to vector<8xi32>
    %49 = vector.shape_cast %48 : vector<8xi32> to vector<8x1xi32>
    %c0_i32_13 = arith.constant 0 : i32
    %50 = vector.broadcast %c0_i32_13 : i32 to vector<8x1xi32>
    %51 = arith.cmpi sge, %43, %50 : vector<8x1xi32>
    %c2147483647_i32_14 = arith.constant 2147483647 : i32
    %52 = vector.broadcast %c2147483647_i32_14 : i32 to vector<8x1xi32>
    %53 = arith.xori %43, %52 : vector<8x1xi32>
    %54 = arith.select %51, %43, %53 : vector<8x1xi1>, vector<8x1xi32>
    %55 = vector.broadcast %49 : vector<8x1xi32> to vector<8x512xi32>
    %56 = arith.cmpi eq, %7, %55 : vector<8x512xi32>
    %c-2147483648_i32_15 = arith.constant -2147483648 : i32
    %57 = vector.broadcast %c-2147483648_i32_15 : i32 to vector<8x512xi32>
    %58 = arith.select %56, %57, %41 : vector<8x512xi1>, vector<8x512xi32>
    %cst_16 = arith.constant dense<-2147483648> : vector<8xi32>
    %59 = vector.multi_reduction <maxsi>, %58, %cst_16 [1] : vector<8x512xi32> to vector<8xi32>
    %60 = vector.shape_cast %59 : vector<8xi32> to vector<8x1xi32>
    %61 = vector.broadcast %60 : vector<8x1xi32> to vector<8x512xi32>
    %62 = arith.cmpi eq, %58, %61 : vector<8x512xi32>
    %c512_i32_17 = arith.constant 512 : i32
    %63 = vector.broadcast %c512_i32_17 : i32 to vector<8x512xi32>
    %64 = arith.select %62, %7, %63 : vector<8x512xi1>, vector<8x512xi32>
    %cst_18 = arith.constant dense<2147483647> : vector<8xi32>
    %65 = vector.multi_reduction <minsi>, %64, %cst_18 [1] : vector<8x512xi32> to vector<8xi32>
    %66 = vector.shape_cast %65 : vector<8xi32> to vector<8x1xi32>
    %c0_i32_19 = arith.constant 0 : i32
    %67 = vector.broadcast %c0_i32_19 : i32 to vector<8x1xi32>
    %68 = arith.cmpi sge, %60, %67 : vector<8x1xi32>
    %c2147483647_i32_20 = arith.constant 2147483647 : i32
    %69 = vector.broadcast %c2147483647_i32_20 : i32 to vector<8x1xi32>
    %70 = arith.xori %60, %69 : vector<8x1xi32>
    %71 = arith.select %68, %60, %70 : vector<8x1xi1>, vector<8x1xi32>
    %72 = tpu.iota {dimensions = array<i32: 1>} : vector<8x8xi32>
    %c0_i32_21 = arith.constant 0 : i32
    %73 = vector.broadcast %c0_i32_21 : i32 to vector<8x8xi32>
    %c0_i32_22 = arith.constant 0 : i32
    %74 = vector.broadcast %c0_i32_22 : i32 to vector<8x8xi32>
    %75 = arith.cmpi eq, %72, %74 : vector<8x8xi32>
    %76 = vector.shape_cast %20 : vector<8x1xi32> to vector<8x1xi32>
    %77 = vector.broadcast %76 : vector<8x1xi32> to vector<8x8xi32>
    %78 = arith.select %75, %77, %73 : vector<8x8xi1>, vector<8x8xi32>
    %c4_i32 = arith.constant 4 : i32
    %79 = vector.broadcast %c4_i32 : i32 to vector<8x8xi32>
    %80 = arith.cmpi eq, %72, %79 : vector<8x8xi32>
    %81 = vector.shape_cast %15 : vector<8x1xi32> to vector<8x1xi32>
    %82 = vector.broadcast %81 : vector<8x1xi32> to vector<8x8xi32>
    %83 = arith.select %80, %82, %78 : vector<8x8xi1>, vector<8x8xi32>
    %c1_i32 = arith.constant 1 : i32
    %84 = vector.broadcast %c1_i32 : i32 to vector<8x8xi32>
    %85 = arith.cmpi eq, %72, %84 : vector<8x8xi32>
    %86 = vector.shape_cast %37 : vector<8x1xi32> to vector<8x1xi32>
    %87 = vector.broadcast %86 : vector<8x1xi32> to vector<8x8xi32>
    %88 = arith.select %85, %87, %83 : vector<8x8xi1>, vector<8x8xi32>
    %c5_i32 = arith.constant 5 : i32
    %89 = vector.broadcast %c5_i32 : i32 to vector<8x8xi32>
    %90 = arith.cmpi eq, %72, %89 : vector<8x8xi32>
    %91 = vector.shape_cast %32 : vector<8x1xi32> to vector<8x1xi32>
    %92 = vector.broadcast %91 : vector<8x1xi32> to vector<8x8xi32>
    %93 = arith.select %90, %92, %88 : vector<8x8xi1>, vector<8x8xi32>
    %c2_i32 = arith.constant 2 : i32
    %94 = vector.broadcast %c2_i32 : i32 to vector<8x8xi32>
    %95 = arith.cmpi eq, %72, %94 : vector<8x8xi32>
    %96 = vector.shape_cast %54 : vector<8x1xi32> to vector<8x1xi32>
    %97 = vector.broadcast %96 : vector<8x1xi32> to vector<8x8xi32>
    %98 = arith.select %95, %97, %93 : vector<8x8xi1>, vector<8x8xi32>
    %c6_i32 = arith.constant 6 : i32
    %99 = vector.broadcast %c6_i32 : i32 to vector<8x8xi32>
    %100 = arith.cmpi eq, %72, %99 : vector<8x8xi32>
    %101 = vector.shape_cast %49 : vector<8x1xi32> to vector<8x1xi32>
    %102 = vector.broadcast %101 : vector<8x1xi32> to vector<8x8xi32>
    %103 = arith.select %100, %102, %98 : vector<8x8xi1>, vector<8x8xi32>
    %c3_i32 = arith.constant 3 : i32
    %104 = vector.broadcast %c3_i32 : i32 to vector<8x8xi32>
    %105 = arith.cmpi eq, %72, %104 : vector<8x8xi32>
    %106 = vector.shape_cast %71 : vector<8x1xi32> to vector<8x1xi32>
    %107 = vector.broadcast %106 : vector<8x1xi32> to vector<8x8xi32>
    %108 = arith.select %105, %107, %103 : vector<8x8xi1>, vector<8x8xi32>
    %c7_i32 = arith.constant 7 : i32
    %109 = vector.broadcast %c7_i32 : i32 to vector<8x8xi32>
    %110 = arith.cmpi eq, %72, %109 : vector<8x8xi32>
    %111 = vector.shape_cast %66 : vector<8x1xi32> to vector<8x1xi32>
    %112 = vector.broadcast %111 : vector<8x1xi32> to vector<8x8xi32>
    %113 = arith.select %110, %112, %108 : vector<8x8xi1>, vector<8x8xi32>
    %c0_23 = arith.constant 0 : index
    %c0_24 = arith.constant 0 : index
    %114 = vector.load %arg2[%c0_23, %c0_24] : memref<8x8xi32, #tpu.memory_space<vmem>>, vector<8x8xi32>
    tpu.vector_store %arg2[%c0_23, %c0_24], %113 {strides = array<i32>} : memref<8x8xi32, #tpu.memory_space<vmem>>, vector<8x8xi32>,
    return
  }
  func.func @transform_0(%arg0: i32) -> (i32, i32) {
    %c0_i32 = arith.constant 0 : i32
    %c0_i32_0 = arith.constant 0 : i32
    return %arg0, %c0_i32 : i32, i32
  }
  func.func @transform_1(%arg0: i32) -> (i32, i32) {
    %c0_i32 = arith.constant 0 : i32
    %c0_i32_0 = arith.constant 0 : i32
    return %arg0, %c0_i32 : i32, i32
  }
}

</mosaic_0001>

<llo_original>
// kernel: tpu_custom_call.1
$region0: #{tpu_custom_call.1}
  #allocation0 [shape = 'u32[]', space=smem, size = 0x4, offset = 0x4, fixed_abs, tag = 'smem constant byte address 0x4 - core index']
  #allocation1 [shape = 'u32[72,128]{1,0:T(1,128)}', space=vmem, size = 0x9000, scoped, tag = 'internal scratch']
  %s0 = inlined_call_operand.hbm [shape: f32[8,512], index: 0, kind: input, shape index: {}]
  %s1 = inlined_call_operand.hbm [shape: s32[8,8], index: 1, kind: output, shape index: {}]
  %s2 = sld [smem:[#allocation0]]
  $region18: #{tpu_custom_call.1} parent=0
    _
  %s4 = ssub.s32 1, %s2
  %s5 = scalar_select 0, %s4, %s2
  $region1: #{tpu_custom_call.1} parent=0
    #allocation2 [shape = 'u8[16384]{0}', space=vmem, size = 0x4000, scoped, tag = 'input window, operand 0, single buffered']
    #allocation3 [shape = 's32[1]{0}', space=sflag, size = 0x4, scoped, tag = 'scoped memory for tpu_custom_call.1']
    #allocation4 [shape = 's32[1]{0}', space=sflag, size = 0x4, scoped, tag = 'scoped memory for tpu_custom_call.1']
    #allocation5 [shape = 'u8[4096]{0}', space=vmem, size = 0x1000, scoped, tag = 'output window, operand 0, single buffered']
    %6 = vsyncpa [#allocation3], 0
    %7 = vsyncpa [#allocation4], 0
    // Predicated region
    $region2: #{tpu_custom_call.1} parent=1 // pred_check
      _
    $region3: #{tpu_custom_call.1} parent=1 // pred_check_branch
      %9 = sbr.rel (0) target = $region5
    $region4: #{tpu_custom_call.1} parent=1 // pred_region
      %11 = vsyncadd [#allocation3], 0
      %s13 = sshll.u32 %s0, 4
      %s14 = int_to_ptr.hbm [resolvable:$true] %s13
      %s15 = sshll.u32 [#allocation2], 4
      %s16 = int_to_ptr.vmem [resolvable:$true] %s15
      %18 = dma.hbm_to_vmem [thread:$0]  %s14, 512, %s16, [#allocation3]
    $region5: #{tpu_custom_call.1} parent=1 // pred_fallthru
      _
    // Predicated region
    $region6: #{tpu_custom_call.1} parent=1 // pred_check
      _
    $region7: #{tpu_custom_call.1} parent=1 // pred_check_branch
      %20 = sbr.rel (0) target = $region9
    $region8: #{tpu_custom_call.1} parent=1 // pred_region
      %22 = dma.done [#allocation3], 512
    $region9: #{tpu_custom_call.1} parent=1 // pred_fallthru
      _
    %v23 = vld [vmem:[#allocation2] sm:$0xff]
    %v24 = vld [vmem:[#allocation2 + $0x8] sm:$0xff]
    %v25 = vld [vmem:[#allocation2 + $0x10] sm:$0xff]
    %v26 = vld [vmem:[#allocation2 + $0x18] sm:$0xff]
    %vm31 = vcmp.ge.s32.totalorder %v23, 0
    %vm32 = vcmp.ge.s32.totalorder %v24, 0
    %vm33 = vcmp.ge.s32.totalorder %v25, 0
    %vm34 = vcmp.ge.s32.totalorder %v26, 0
    %v35 = vxor.u32 %v23, 2147483647
    %v36 = vxor.u32 %v24, 2147483647
    %v37 = vxor.u32 %v25, 2147483647
    %v38 = vxor.u32 %v26, 2147483647
    %v39 = vsel %vm31, %v23, %v35
    %v40 = vsel %vm32, %v24, %v36
    %v41 = vsel %vm33, %v25, %v37
    %v42 = vsel %vm34, %v26, %v38
    %v43 = vlaneseq
    %v44 = vand.u32 %v43, 127
    %v45 = vadd.s32 %v44, 128
    %v46 = vadd.s32 %v44, 256
    %v47 = vadd.s32 %v44, 384
    %vm48 = vcmp.gt.s32.totalorder %v39, %v40
    %v49 = vsel %vm48, %v39, %v40
    %vm50 = vcmp.gt.s32.totalorder %v41, %v42
    %v51 = vsel %vm50, %v41, %v42
    %vm52 = vcmp.gt.s32.totalorder %v49, %v51
    %v53 = vsel %vm52, %v49, %v51
    %v54 = vand.u32 %v53, 65535
    %v55 = vshra.s32 %v53, 16
    %v56 = vcvt.s32.f32 %v54
    %v57 = vcvt.s32.f32 %v55
    %58 = vmax.xlane.f32.xlu0 %v57
    %v59 = vpop.xlane.xlu0 %58
    %vm60 = vcmp.eq.f32.partialorder %v57, %v59
    %v61 = vsel %vm60, %v56, -inf
    %62 = vmax.xlane.f32.xlu0 %v61
    %v63 = vpop.xlane.xlu0 %62
    %v64 = vcvt.f32.s32 %v63
    %v65 = vcvt.f32.s32 %v59
    %v66 = vshll.u32 %v65, 16
    %v67 = vadd.s32 %v66, %v64
    %vm68 = vcmp.eq.s32.totalorder %v39, %v67
    %vm69 = vcmp.eq.s32.totalorder %v40, %v67
    %vm70 = vcmp.eq.s32.totalorder %v41, %v67
    %vm71 = vcmp.eq.s32.totalorder %v42, %v67
    %v72 = vsel %vm68, %v44, 512
    %v73 = vsel %vm69, %v45, 512
    %v74 = vsel %vm70, %v46, 512
    %v75 = vsel %vm71, %v47, 512
    %vm76 = vcmp.lt.s32.totalorder %v72, %v73
    %v77 = vsel %vm76, %v72, %v73
    %vm78 = vcmp.lt.s32.totalorder %v74, %v75
    %v79 = vsel %vm78, %v74, %v75
    %vm80 = vcmp.lt.s32.totalorder %v77, %v79
    %v81 = vsel %vm80, %v77, %v79
    %v82 = vand.u32 %v81, 65535
    %v83 = vshra.s32 %v81, 16
    %v84 = vcvt.s32.f32 %v82
    %v85 = vcvt.s32.f32 %v83
    %86 = vmin.xlane.f32.xlu0 %v85
    %v87 = vpop.xlane.xlu0 %86
    %vm88 = vcmp.eq.f32.partialorder %v85, %v87
    %v89 = vsel %vm88, %v84, inf
    %90 = vmin.xlane.f32.xlu0 %v89
    %v91 = vpop.xlane.xlu0 %90
    %v92 = vcvt.f32.s32 %v91
    %v93 = vcvt.f32.s32 %v87
    %v94 = vshll.u32 %v93, 16
    %v95 = vadd.s32 %v94, %v92
    %vm96 = vcmp.ge.s32.totalorder %v67, 0
    %v97 = vxor.u32 %v67, 2147483647
    %v98 = vsel %vm96, %v67, %v97
    %vm99 = vcmp.eq.s32.totalorder %v44, %v95
    %vm100 = vcmp.eq.s32.totalorder %v45, %v95
    %vm101 = vcmp.eq.s32.totalorder %v46, %v95
    %vm102 = vcmp.eq.s32.totalorder %v47, %v95
    %v103 = vsel %vm99, 2147483648, %v39
    %v104 = vsel %vm100, 2147483648, %v40
    %v105 = vsel %vm101, 2147483648, %v41
    %v106 = vsel %vm102, 2147483648, %v42
    %vm107 = vcmp.gt.s32.totalorder %v103, %v104
    %v108 = vsel %vm107, %v103, %v104
    %vm109 = vcmp.gt.s32.totalorder %v105, %v106
    %v110 = vsel %vm109, %v105, %v106
    %vm111 = vcmp.gt.s32.totalorder %v108, %v110
    %v112 = vsel %vm111, %v108, %v110
    %v113 = vand.u32 %v112, 65535
    %v114 = vshra.s32 %v112, 16
    %v115 = vcvt.s32.f32 %v113
    %v116 = vcvt.s32.f32 %v114
    %117 = vmax.xlane.f32.xlu0 %v116
    %v118 = vpop.xlane.xlu0 %117
    %vm119 = vcmp.eq.f32.partialorder %v116, %v118
    %v120 = vsel %vm119, %v115, -inf
    %121 = vmax.xlane.f32.xlu0 %v120
    %v122 = vpop.xlane.xlu0 %121
    %v123 = vcvt.f32.s32 %v122
    %v124 = vcvt.f32.s32 %v118
    %v125 = vshll.u32 %v124, 16
    %v126 = vadd.s32 %v125, %v123
    %vm127 = vcmp.eq.s32.totalorder %v103, %v126
    %vm128 = vcmp.eq.s32.totalorder %v104, %v126
    %vm129 = vcmp.eq.s32.totalorder %v105, %v126
    %vm130 = vcmp.eq.s32.totalorder %v106, %v126
    %v131 = vsel %vm127, %v44, 512
    %v132 = vsel %vm128, %v45, 512
    %v133 = vsel %vm129, %v46, 512
    %v134 = vsel %vm130, %v47, 512
    %vm135 = vcmp.lt.s32.totalorder %v131, %v132
    %v136 = vsel %vm135, %v131, %v132
    %vm137 = vcmp.lt.s32.totalorder %v133, %v134
    %v138 = vsel %vm137, %v133, %v134
    %vm139 = vcmp.lt.s32.totalorder %v136, %v138
    %v140 = vsel %vm139, %v136, %v138
    %v141 = vand.u32 %v140, 65535
    %v142 = vshra.s32 %v140, 16
    %v143 = vcvt.s32.f32 %v141
    %v144 = vcvt.s32.f32 %v142
    %145 = vmin.xlane.f32.xlu0 %v144
    %v146 = vpop.xlane.xlu0 %145
    %vm147 = vcmp.eq.f32.partialorder %v144, %v146
    %v148 = vsel %vm147, %v143, inf
    %149 = vmin.xlane.f32.xlu0 %v148
    %v150 = vpop.xlane.xlu0 %149
    %v151 = vcvt.f32.s32 %v150
    %v152 = vcvt.f32.s32 %v146
    %v153 = vshll.u32 %v152, 16
    %v154 = vadd.s32 %v153, %v151
    %vm155 = vcmp.ge.s32.totalorder %v126, 0
    %v156 = vxor.u32 %v126, 2147483647
    %v157 = vsel %vm155, %v126, %v156
    %vm158 = vcmp.eq.s32.totalorder %v44, %v154
    %vm159 = vcmp.eq.s32.totalorder %v45, %v154
    %vm160 = vcmp.eq.s32.totalorder %v46, %v154
    %vm161 = vcmp.eq.s32.totalorder %v47, %v154
    %v162 = vsel %vm158, 2147483648, %v103
    %v163 = vsel %vm159, 2147483648, %v104
    %v164 = vsel %vm160, 2147483648, %v105
    %v165 = vsel %vm161, 2147483648, %v106
    %vm166 = vcmp.gt.s32.totalorder %v162, %v163
    %v167 = vsel %vm166, %v162, %v163
    %vm168 = vcmp.gt.s32.totalorder %v164, %v165
    %v169 = vsel %vm168, %v164, %v165
    %vm170 = vcmp.gt.s32.totalorder %v167, %v169
    %v171 = vsel %vm170, %v167, %v169
    %v172 = vand.u32 %v171, 65535
    %v173 = vshra.s32 %v171, 16
    %v174 = vcvt.s32.f32 %v172
    %v175 = vcvt.s32.f32 %v173
    %176 = vmax.xlane.f32.xlu0 %v175
    %v177 = vpop.xlane.xlu0 %176
    %vm178 = vcmp.eq.f32.partialorder %v175, %v177
    %v179 = vsel %vm178, %v174, -inf
    %180 = vmax.xlane.f32.xlu0 %v179
    %v181 = vpop.xlane.xlu0 %180
    %v182 = vcvt.f32.s32 %v181
    %v183 = vcvt.f32.s32 %v177
    %v184 = vshll.u32 %v183, 16
    %v185 = vadd.s32 %v184, %v182
    %vm186 = vcmp.eq.s32.totalorder %v162, %v185
    %vm187 = vcmp.eq.s32.totalorder %v163, %v185
    %vm188 = vcmp.eq.s32.totalorder %v164, %v185
    %vm189 = vcmp.eq.s32.totalorder %v165, %v185
    %v190 = vsel %vm186, %v44, 512
    %v191 = vsel %vm187, %v45, 512
    %v192 = vsel %vm188, %v46, 512
    %v193 = vsel %vm189, %v47, 512
    %vm194 = vcmp.lt.s32.totalorder %v190, %v191
    %v195 = vsel %vm194, %v190, %v191
    %vm196 = vcmp.lt.s32.totalorder %v192, %v193
    %v197 = vsel %vm196, %v192, %v193
    %vm198 = vcmp.lt.s32.totalorder %v195, %v197
    %v199 = vsel %vm198, %v195, %v197
    %v200 = vand.u32 %v199, 65535
    %v201 = vshra.s32 %v199, 16
    %v202 = vcvt.s32.f32 %v200
    %v203 = vcvt.s32.f32 %v201
    %204 = vmin.xlane.f32.xlu0 %v203
    %v205 = vpop.xlane.xlu0 %204
    %vm206 = vcmp.eq.f32.partialorder %v203, %v205
    %v207 = vsel %vm206, %v202, inf
    %208 = vmin.xlane.f32.xlu0 %v207
    %v209 = vpop.xlane.xlu0 %208
    %v210 = vcvt.f32.s32 %v209
    %v211 = vcvt.f32.s32 %v205
    %v212 = vshll.u32 %v211, 16
    %v213 = vadd.s32 %v212, %v210
    %vm214 = vcmp.ge.s32.totalorder %v185, 0
    %v215 = vxor.u32 %v185, 2147483647
    %v216 = vsel %vm214, %v185, %v215
    %vm217 = vcmp.eq.s32.totalorder %v44, %v213
    %vm218 = vcmp.eq.s32.totalorder %v45, %v213
    %vm219 = vcmp.eq.s32.totalorder %v46, %v213
    %vm220 = vcmp.eq.s32.totalorder %v47, %v213
    %v221 = vsel %vm217, 2147483648, %v162
    %v222 = vsel %vm218, 2147483648, %v163
    %v223 = vsel %vm219, 2147483648, %v164
    %v224 = vsel %vm220, 2147483648, %v165
    %vm225 = vcmp.gt.s32.totalorder %v221, %v222
    %v226 = vsel %vm225, %v221, %v222
    %vm227 = vcmp.gt.s32.totalorder %v223, %v224
    %v228 = vsel %vm227, %v223, %v224
    %vm229 = vcmp.gt.s32.totalorder %v226, %v228
    %v230 = vsel %vm229, %v226, %v228
    %v231 = vand.u32 %v230, 65535
    %v232 = vshra.s32 %v230, 16
    %v233 = vcvt.s32.f32 %v231
    %v234 = vcvt.s32.f32 %v232
    %235 = vmax.xlane.f32.xlu0 %v234
    %v236 = vpop.xlane.xlu0 %235
    %vm237 = vcmp.eq.f32.partialorder %v234, %v236
    %v238 = vsel %vm237, %v233, -inf
    %239 = vmax.xlane.f32.xlu0 %v238
    %v240 = vpop.xlane.xlu0 %239
    %v241 = vcvt.f32.s32 %v240
    %v242 = vcvt.f32.s32 %v236
    %v243 = vshll.u32 %v242, 16
    %v244 = vadd.s32 %v243, %v241
    %vm245 = vcmp.eq.s32.totalorder %v221, %v244
    %vm246 = vcmp.eq.s32.totalorder %v222, %v244
    %vm247 = vcmp.eq.s32.totalorder %v223, %v244
    %vm248 = vcmp.eq.s32.totalorder %v224, %v244
    %v249 = vsel %vm245, %v44, 512
    %v250 = vsel %vm246, %v45, 512
    %v251 = vsel %vm247, %v46, 512
    %v252 = vsel %vm248, %v47, 512
    %vm253 = vcmp.lt.s32.totalorder %v249, %v250
    %v254 = vsel %vm253, %v249, %v250
    %vm255 = vcmp.lt.s32.totalorder %v251, %v252
    %v256 = vsel %vm255, %v251, %v252
    %vm257 = vcmp.lt.s32.totalorder %v254, %v256
    %v258 = vsel %vm257, %v254, %v256
    %v259 = vand.u32 %v258, 65535
    %v260 = vshra.s32 %v258, 16
    %v261 = vcvt.s32.f32 %v259
    %v262 = vcvt.s32.f32 %v260
    %263 = vmin.xlane.f32.xlu0 %v262
    %v264 = vpop.xlane.xlu0 %263
    %vm265 = vcmp.eq.f32.partialorder %v262, %v264
    %v266 = vsel %vm265, %v261, inf
    %267 = vmin.xlane.f32.xlu0 %v266
    %v268 = vpop.xlane.xlu0 %267
    %v269 = vcvt.f32.s32 %v268
    %v270 = vcvt.f32.s32 %v264
    %v271 = vshll.u32 %v270, 16
    %v272 = vadd.s32 %v271, %v269
    %vm273 = vcmp.ge.s32.totalorder %v244, 0
    %v274 = vxor.u32 %v244, 2147483647
    %v275 = vsel %vm273, %v244, %v274
    %vm276 = vcmp.eq.s32.totalorder %v44, 0
    %v277 = vsel %vm276, %v98, 0
    %vm278 = vcmp.eq.s32.totalorder %v44, 4
    %v279 = vsel %vm278, %v95, %v277
    %vm280 = vcmp.eq.s32.totalorder %v44, 1
    %v281 = vsel %vm280, %v157, %v279
    %vm282 = vcmp.eq.s32.totalorder %v44, 5
    %v283 = vsel %vm282, %v154, %v281
    %vm284 = vcmp.eq.s32.totalorder %v44, 2
    %v285 = vsel %vm284, %v216, %v283
    %vm286 = vcmp.eq.s32.totalorder %v44, 6
    %v287 = vsel %vm286, %v213, %v285
    %vm288 = vcmp.eq.s32.totalorder %v44, 3
    %v289 = vsel %vm288, %v275, %v287
    %vm290 = vcmp.eq.s32.totalorder %v44, 7
    %v291 = vsel %vm290, %v272, %v289
    %vm292 = vcmask 64512
    %293 = vst.msk [vmem:[#allocation5] sm:$0xff] %vm292, %v291
    // Predicated region
    $region10: #{tpu_custom_call.1} parent=1 // pred_check
      _
    $region11: #{tpu_custom_call.1} parent=1 // pred_check_branch
      %295 = sbr.rel (0) target = $region13
    $region12: #{tpu_custom_call.1} parent=1 // pred_region
      %297 = vsyncadd [#allocation4], 0
      %s299 = sshll.u32 [#allocation5], 4
      %s300 = int_to_ptr.vmem [resolvable:$true] %s299
      %s301 = sshll.u32 %s1, 4
      %s302 = int_to_ptr.hbm [resolvable:$true] %s301
      %304 = dma.vmem_to_hbm [thread:$0]  %s300, 128, %s302, [#allocation4]
    $region13: #{tpu_custom_call.1} parent=1 // pred_fallthru
      _
    // Predicated region
    $region14: #{tpu_custom_call.1} parent=1 // pred_check
      _
    $region15: #{tpu_custom_call.1} parent=1 // pred_check_branch
      %306 = sbr.rel (0) target = $region17
    $region16: #{tpu_custom_call.1} parent=1 // pred_region
      %308 = dma.done [#allocation4], 128
    $region17: #{tpu_custom_call.1} parent=1 // pred_fallthru
      _
    %309 = vsyncpa [#allocation3], 1
    %310 = vsyncpa [#allocation4], 1

</llo_original>
